<compile_context>
chip_gen: v7x
topology: tpu7x:2x2x1
jax: 0.10.0
libtpu: 0.0.40
codegen_flags: <defaults>
</compile_context>

<pallas_src>
import functools

import jax
import jax.numpy as jnp
from jax.experimental import pallas as pl
from jax.experimental.pallas import tpu as pltpu

# ----------------------- model hyper-parameters (small) -----------------------
INPUT_DIM = 16
LATENT_FEATURE_DIM = 8
NUM_BLOCKS = 3                 # -> 2 hidden (weight-shared) blocks
NUM_LAYERS_PER_BLOCK = 2
NUM_UNITS = 32
ACTIVATION = "relu"

NUM_HIDDEN_BLOCKS = NUM_BLOCKS - 1

BATCH = 512                    # main batch (batch is the perf dimension)
TM_DEFAULT = 256               # default batch tile (lane axis)
LANE = 128                     # minimum lane-dense tile width


def _act(x):
    # activation = 'relu'
    return jnp.maximum(x, 0.0)


def _round_up(n, m):
    return ((n + m - 1) // m) * m


# --------------------------------- kernel -------------------------------------
def densenet_kernel(x_ref, w0_ref, b0_ref, wh_ref, bh_ref, wl_ref, bl_ref, o_ref):
    # All activations are [feature, TM]: features on sublanes, batch on lanes
    # (lane-dense vregs, unmasked output stores). Matmuls hit the MXU.
    tm = x_ref.shape[1]

    # Block 0: [NUM_UNITS, INPUT_DIM] @ [INPUT_DIM, TM] -> [NUM_UNITS, TM]
    h = jnp.dot(w0_ref[...], x_ref[...], preferred_element_type=jnp.float32)
    h = _act(h + b0_ref[...])                      # b0 is [NUM_UNITS, 1], bcast over lanes

    # Hidden blocks: each re-applies ONE shared Linear num_layers_per_block times.
    for blk in range(NUM_HIDDEN_BLOCKS):
        w = wh_ref[blk]                            # [NUM_UNITS, NUM_UNITS]
        # Hoist the bias broadcast out of the unrolled inner layer loop.
        b = jnp.broadcast_to(bh_ref[blk], (NUM_UNITS, tm))
        for _ in range(NUM_LAYERS_PER_BLOCK):
            h = jnp.dot(w, h, preferred_element_type=jnp.float32)
            h = _act(h + b)

    # Last layer: [LATENT, NUM_UNITS] @ [NUM_UNITS, TM] -> [LATENT, TM], no act.
    out = jnp.dot(wl_ref[...], h, preferred_element_type=jnp.float32) + bl_ref[...]
    o_ref[...] = out.astype(o_ref.dtype)


# -------------------------------- wrapper --------------------------------------
@functools.partial(jax.jit, static_argnames=("tm",))
def implicit_densenet_forward(x, w0, b0, wh, bh, wl, bl, tm=TM_DEFAULT):
    """x: [batch, INPUT_DIM]  ->  [batch, LATENT_FEATURE_DIM]."""
    batch = x.shape[0]

    # Adaptive batch tile: lane-dense (multiple of 128) but never bigger than the
    # (lane-rounded) batch, so small batches are one small tile instead of a
    # full-width tile of mostly padding.
    tm_eff = min(tm, _round_up(batch, LANE))
    padded = _round_up(batch, tm_eff)

    # Layout plumbing in the wrapper: batch onto the lane axis.
    x_t = jnp.transpose(x)                                   # [INPUT_DIM, batch]
    if padded != batch:
        x_t = jnp.pad(x_t, ((0, 0), (0, padded - batch)))

    grid = (padded // tm_eff,)
    const2 = lambda i: (0, 0)
    const3 = lambda i: (0, 0, 0)

    y_t = pl.pallas_call(
        densenet_kernel,
        out_shape=jax.ShapeDtypeStruct((LATENT_FEATURE_DIM, padded), x.dtype),
        grid_spec=pltpu.PrefetchScalarGridSpec(
            num_scalar_prefetch=0,
            grid=grid,
            in_specs=[
                # Activations tile over batch (lane axis).
                pl.BlockSpec((INPUT_DIM, tm_eff), lambda i: (0, i)),
                # Weights / biases: constant index_map -> VMEM-resident across grid.
                pl.BlockSpec((NUM_UNITS, INPUT_DIM), const2),
                pl.BlockSpec((NUM_UNITS, 1), const2),
                pl.BlockSpec((NUM_HIDDEN_BLOCKS, NUM_UNITS, NUM_UNITS), const3),
                pl.BlockSpec((NUM_HIDDEN_BLOCKS, NUM_UNITS, 1), const3),
                pl.BlockSpec((LATENT_FEATURE_DIM, NUM_UNITS), const2),
                pl.BlockSpec((LATENT_FEATURE_DIM, 1), const2),
            ],
            out_specs=pl.BlockSpec((LATENT_FEATURE_DIM, tm_eff), lambda i: (0, i)),
        ),
        compiler_params=pltpu.CompilerParams(
            dimension_semantics=("parallel",),       # shards batch tiles across TCs on v7x
        ),
    )(x_t, w0, b0, wh, bh, wl, bl)

    return jnp.transpose(y_t)[:batch]                        # [batch, LATENT_FEATURE_DIM]


# ---------------------------- pure-JAX reference --------------------------------
def reference_forward(x, w0, b0, wh, bh, wl, bl):
    # PyTorch Linear semantics: y = x @ W^T + b, with W in [out, in] layout.
    h = _act(x @ w0.T + b0[:, 0])
    for blk in range(NUM_HIDDEN_BLOCKS):
        for _ in range(NUM_LAYERS_PER_BLOCK):
            h = _act(h @ wh[blk].T + bh[blk, :, 0])
    return h @ wl.T + bl[:, 0]


# ------------------------------- param init ------------------------------------
def init_params(key):
    ks = jax.random.split(key, 6)
    # Natural PyTorch layout: weights [out, in], biases [out, 1].
    w0 = jax.random.normal(ks[0], (NUM_UNITS, INPUT_DIM), jnp.float32) * 0.1
    b0 = jax.random.normal(ks[1], (NUM_UNITS, 1), jnp.float32) * 0.1
    wh = jax.random.normal(
        ks[2], (NUM_HIDDEN_BLOCKS, NUM_UNITS, NUM_UNITS), jnp.float32) * 0.1
    bh = jax.random.normal(
        ks[3], (NUM_HIDDEN_BLOCKS, NUM_UNITS, 1), jnp.float32) * 0.1
    wl = jax.random.normal(ks[4], (LATENT_FEATURE_DIM, NUM_UNITS), jnp.float32) * 0.1
    bl = jax.random.normal(ks[5], (LATENT_FEATURE_DIM, 1), jnp.float32) * 0.1
    return w0, b0, wh, bh, wl, bl


if __name__ == "__main__":
    key = jax.random.PRNGKey(0)
    kx1, kx2, kp = jax.random.split(key, 3)
    params = init_params(kp)

    # Main run: batch-tiled (grid of BATCH // TM = 2 tiles, lane-dense).
    x_big = jax.random.normal(kx1, (BATCH, INPUT_DIM), jnp.float32)
    out_big = jax.block_until_ready(implicit_densenet_forward(x_big, *params))
    ref_big = reference_forward(x_big, *params)
    assert out_big.shape == (BATCH, LATENT_FEATURE_DIM)
    assert jnp.allclose(out_big, ref_big, atol=1e-5, rtol=1e-5)

    # Small / ragged batch: exercises the adaptive-tile padding path
    # (pads to one 128-wide tile instead of a full 256-wide tile).
    x_small = jax.random.normal(kx2, (5, INPUT_DIM), jnp.float32)
    out_small = jax.block_until_ready(implicit_densenet_forward(x_small, *params))
    ref_small = reference_forward(x_small, *params)
    assert out_small.shape == (5, LATENT_FEATURE_DIM)
    assert jnp.allclose(out_small, ref_small, atol=1e-5, rtol=1e-5)

    print("KERNEL_OK")
</pallas_src>

<mosaic_0001>
module attributes {stable_mosaic.version = 11 : i64} {
  func.func @densenet_kernel(%arg0: i32, %arg1: memref<16x256xf32, #tpu.memory_space<vmem>>, %arg2: memref<32x16xf32, #tpu.memory_space<vmem>>, %arg3: memref<32x1xf32, #tpu.memory_space<vmem>>, %arg4: memref<2x32x32xf32, #tpu.memory_space<vmem>>, %arg5: memref<2x32x1xf32, #tpu.memory_space<vmem>>, %arg6: memref<8x32xf32, #tpu.memory_space<vmem>>, %arg7: memref<8x1xf32, #tpu.memory_space<vmem>>, %arg8: memref<8x256xf32, #tpu.memory_space<vmem>>) attributes {dimension_semantics = [#tpu.dimension_semantics<parallel>], iteration_bounds = array<i64: 2>, scalar_prefetch = 0 : i64, scratch_operands = 0 : i64, tpu.core_type = #tpu.core_type<tc>, window_params = [{transform_indices = @transform_0, window_bounds = array<i64: 16, 256>}, {pipeline_mode = #tpu.pipeline_mode<synchronous>, transform_indices = @transform_1, window_bounds = array<i64: 32, 16>}, {pipeline_mode = #tpu.pipeline_mode<synchronous>, transform_indices = @transform_2, window_bounds = array<i64: 32, 1>}, {pipeline_mode = #tpu.pipeline_mode<synchronous>, transform_indices = @transform_3, window_bounds = array<i64: 2, 32, 32>}, {pipeline_mode = #tpu.pipeline_mode<synchronous>, transform_indices = @transform_4, window_bounds = array<i64: 2, 32, 1>}, {pipeline_mode = #tpu.pipeline_mode<synchronous>, transform_indices = @transform_5, window_bounds = array<i64: 8, 32>}, {pipeline_mode = #tpu.pipeline_mode<synchronous>, transform_indices = @transform_6, window_bounds = array<i64: 8, 1>}, {transform_indices = @transform_7, window_bounds = array<i64: 8, 256>}]} {
    %c0 = arith.constant 0 : index
    %c0_0 = arith.constant 0 : index
    %0 = vector.load %arg2[%c0, %c0_0] : memref<32x16xf32, #tpu.memory_space<vmem>>, vector<32x16xf32>
    %c0_1 = arith.constant 0 : index
    %c0_2 = arith.constant 0 : index
    %1 = vector.load %arg1[%c0_1, %c0_2] : memref<16x256xf32, #tpu.memory_space<vmem>>, vector<16x256xf32>
    %cst = arith.constant dense<0.000000e+00> : vector<32x256xf32>
    %2 = tpu.matmul %0, %1, %cst {dimension_numbers = #tpu.dot_dimension_numbers<[1], [0], [0], [1], [0, 0, 1, 1], [], []>} : vector<32x16xf32>, vector<16x256xf32>, vector<32x256xf32> -> vector<32x256xf32>
    %c0_3 = arith.constant 0 : index
    %c0_4 = arith.constant 0 : index
    %3 = vector.load %arg3[%c0_3, %c0_4] : memref<32x1xf32, #tpu.memory_space<vmem>>, vector<32x1xf32>
    %4 = vector.broadcast %3 : vector<32x1xf32> to vector<32x256xf32>
    %5 = arith.addf %2, %4 : vector<32x256xf32>
    %cst_5 = arith.constant 0.000000e+00 : f32
    %6 = vector.broadcast %cst_5 : f32 to vector<32x256xf32>
    %7 = arith.maximumf %5, %6 : vector<32x256xf32>
    %c0_6 = arith.constant 0 : index
    %c0_7 = arith.constant 0 : index
    %c0_8 = arith.constant 0 : index
    %8 = vector.load %arg4[%c0_6, %c0_7, %c0_8] : memref<2x32x32xf32, #tpu.memory_space<vmem>>, vector<1x32x32xf32>
    %9 = vector.shape_cast %8 : vector<1x32x32xf32> to vector<32x32xf32>
    %c0_9 = arith.constant 0 : index
    %c0_10 = arith.constant 0 : index
    %c0_11 = arith.constant 0 : index
    %10 = vector.load %arg5[%c0_9, %c0_10, %c0_11] : memref<2x32x1xf32, #tpu.memory_space<vmem>>, vector<1x32x1xf32>
    %11 = vector.shape_cast %10 : vector<1x32x1xf32> to vector<32x1xf32>
    %12 = vector.shape_cast %11 : vector<32x1xf32> to vector<32x1xf32>
    %13 = vector.broadcast %12 : vector<32x1xf32> to vector<32x256xf32>
    %cst_12 = arith.constant dense<0.000000e+00> : vector<32x256xf32>
    %14 = tpu.matmul %9, %7, %cst_12 {dimension_numbers = #tpu.dot_dimension_numbers<[1], [0], [0], [1], [0, 0, 1, 1], [], []>} : vector<32x32xf32>, vector<32x256xf32>, vector<32x256xf32> -> vector<32x256xf32>
    %15 = arith.addf %14, %13 : vector<32x256xf32>
    %cst_13 = arith.constant 0.000000e+00 : f32
    %16 = vector.broadcast %cst_13 : f32 to vector<32x256xf32>
    %17 = arith.maximumf %15, %16 : vector<32x256xf32>
    %cst_14 = arith.constant dense<0.000000e+00> : vector<32x256xf32>
    %18 = tpu.matmul %9, %17, %cst_14 {dimension_numbers = #tpu.dot_dimension_numbers<[1], [0], [0], [1], [0, 0, 1, 1], [], []>} : vector<32x32xf32>, vector<32x256xf32>, vector<32x256xf32> -> vector<32x256xf32>
    %19 = arith.addf %18, %13 : vector<32x256xf32>
    %cst_15 = arith.constant 0.000000e+00 : f32
    %20 = vector.broadcast %cst_15 : f32 to vector<32x256xf32>
    %21 = arith.maximumf %19, %20 : vector<32x256xf32>
    %c1 = arith.constant 1 : index
    %c0_16 = arith.constant 0 : index
    %c0_17 = arith.constant 0 : index
    %22 = vector.load %arg4[%c1, %c0_16, %c0_17] : memref<2x32x32xf32, #tpu.memory_space<vmem>>, vector<1x32x32xf32>
    %23 = vector.shape_cast %22 : vector<1x32x32xf32> to vector<32x32xf32>
    %c1_18 = arith.constant 1 : index
    %c0_19 = arith.constant 0 : index
    %c0_20 = arith.constant 0 : index
    %24 = vector.load %arg5[%c1_18, %c0_19, %c0_20] : memref<2x32x1xf32, #tpu.memory_space<vmem>>, vector<1x32x1xf32>
    %25 = vector.shape_cast %24 : vector<1x32x1xf32> to vector<32x1xf32>
    %26 = vector.shape_cast %25 : vector<32x1xf32> to vector<32x1xf32>
    %27 = vector.broadcast %26 : vector<32x1xf32> to vector<32x256xf32>
    %cst_21 = arith.constant dense<0.000000e+00> : vector<32x256xf32>
    %28 = tpu.matmul %23, %21, %cst_21 {dimension_numbers = #tpu.dot_dimension_numbers<[1], [0], [0], [1], [0, 0, 1, 1], [], []>} : vector<32x32xf32>, vector<32x256xf32>, vector<32x256xf32> -> vector<32x256xf32>
    %29 = arith.addf %28, %27 : vector<32x256xf32>
    %cst_22 = arith.constant 0.000000e+00 : f32
    %30 = vector.broadcast %cst_22 : f32 to vector<32x256xf32>
    %31 = arith.maximumf %29, %30 : vector<32x256xf32>
    %cst_23 = arith.constant dense<0.000000e+00> : vector<32x256xf32>
    %32 = tpu.matmul %23, %31, %cst_23 {dimension_numbers = #tpu.dot_dimension_numbers<[1], [0], [0], [1], [0, 0, 1, 1], [], []>} : vector<32x32xf32>, vector<32x256xf32>, vector<32x256xf32> -> vector<32x256xf32>
    %33 = arith.addf %32, %27 : vector<32x256xf32>
    %cst_24 = arith.constant 0.000000e+00 : f32
    %34 = vector.broadcast %cst_24 : f32 to vector<32x256xf32>
    %35 = arith.maximumf %33, %34 : vector<32x256xf32>
    %c0_25 = arith.constant 0 : index
    %c0_26 = arith.constant 0 : index
    %36 = vector.load %arg6[%c0_25, %c0_26] : memref<8x32xf32, #tpu.memory_space<vmem>>, vector<8x32xf32>
    %cst_27 = arith.constant dense<0.000000e+00> : vector<8x256xf32>
    %37 = tpu.matmul %36, %35, %cst_27 {dimension_numbers = #tpu.dot_dimension_numbers<[1], [0], [0], [1], [0, 0, 1, 1], [], []>} : vector<8x32xf32>, vector<32x256xf32>, vector<8x256xf32> -> vector<8x256xf32>
    %c0_28 = arith.constant 0 : index
    %c0_29 = arith.constant 0 : index
    %38 = vector.load %arg7[%c0_28, %c0_29] : memref<8x1xf32, #tpu.memory_space<vmem>>, vector<8x1xf32>
    %39 = vector.broadcast %38 : vector<8x1xf32> to vector<8x256xf32>
    %40 = arith.addf %37, %39 : vector<8x256xf32>
    %c0_30 = arith.constant 0 : index
    %c0_31 = arith.constant 0 : index
    %41 = vector.load %arg8[%c0_30, %c0_31] : memref<8x256xf32, #tpu.memory_space<vmem>>, vector<8x256xf32>
    tpu.vector_store %arg8[%c0_30, %c0_31], %40 {strides = array<i32>} : memref<8x256xf32, #tpu.memory_space<vmem>>, vector<8x256xf32>,
    return
  }
  func.func @transform_0(%arg0: i32) -> (i32, i32) {
    %c0_i32 = arith.constant 0 : i32
    %c0_i32_0 = arith.constant 0 : i32
    return %c0_i32, %arg0 : i32, i32
  }
  func.func @transform_1(%arg0: i32) -> (i32, i32) {
    %c0_i32 = arith.constant 0 : i32
    %c0_i32_0 = arith.constant 0 : i32
    %c0_i32_1 = arith.constant 0 : i32
    return %c0_i32, %c0_i32_0 : i32, i32
  }
  func.func @transform_2(%arg0: i32) -> (i32, i32) {
    %c0_i32 = arith.constant 0 : i32
    %c0_i32_0 = arith.constant 0 : i32
    %c0_i32_1 = arith.constant 0 : i32
    return %c0_i32, %c0_i32_0 : i32, i32
  }
  func.func @transform_3(%arg0: i32) -> (i32, i32, i32) {
    %c0_i32 = arith.constant 0 : i32
    %c0_i32_0 = arith.constant 0 : i32
    %c0_i32_1 = arith.constant 0 : i32
    %c0_i32_2 = arith.constant 0 : i32
    return %c0_i32, %c0_i32_0, %c0_i32_1 : i32, i32, i32
  }
  func.func @transform_4(%arg0: i32) -> (i32, i32, i32) {
    %c0_i32 = arith.constant 0 : i32
    %c0_i32_0 = arith.constant 0 : i32
    %c0_i32_1 = arith.constant 0 : i32
    %c0_i32_2 = arith.constant 0 : i32
    return %c0_i32, %c0_i32_0, %c0_i32_1 : i32, i32, i32
  }
  func.func @transform_5(%arg0: i32) -> (i32, i32) {
    %c0_i32 = arith.constant 0 : i32
    %c0_i32_0 = arith.constant 0 : i32
    %c0_i32_1 = arith.constant 0 : i32
    return %c0_i32, %c0_i32_0 : i32, i32
  }
  func.func @transform_6(%arg0: i32) -> (i32, i32) {
    %c0_i32 = arith.constant 0 : i32
    %c0_i32_0 = arith.constant 0 : i32
    %c0_i32_1 = arith.constant 0 : i32
    return %c0_i32, %c0_i32_0 : i32, i32
  }
  func.func @transform_7(%arg0: i32) -> (i32, i32) {
    %c0_i32 = arith.constant 0 : i32
    %c0_i32_0 = arith.constant 0 : i32
    return %c0_i32, %arg0 : i32, i32
  }
}

</mosaic_0001>

<llo_original>
// kernel: implicit_densenet_forward.1
$region0: #{implicit_densenet_forward.1}
  #allocation0 [shape = 'u32[]', space=smem, size = 0x4, offset = 0x4, fixed_abs, tag = 'smem constant byte address 0x4 - core index']
  #allocation1 [shape = 'u32[144,128]{1,0:T(1,128)}', space=vmem, size = 0x12000, scoped, tag = 'internal scratch']
  %s0 = inlined_call_operand.vmem [shape: f32[16,512], index: 0, kind: input, shape index: {}]
  %s1 = inlined_call_operand.vmem [shape: f32[32,16], index: 1, kind: input, shape index: {}]
  %s2 = inlined_call_operand.vmem [shape: f32[32,1], index: 2, kind: input, shape index: {}]
  %s3 = inlined_call_operand.vmem [shape: f32[2,32,32], index: 3, kind: input, shape index: {}]
  %s4 = inlined_call_operand.vmem [shape: f32[2,32,1], index: 4, kind: input, shape index: {}]
  %s5 = inlined_call_operand.vmem [shape: f32[8,32], index: 5, kind: input, shape index: {}]
  %s6 = inlined_call_operand.vmem [shape: f32[8,1], index: 6, kind: input, shape index: {}]
  %s7 = inlined_call_operand.hbm [shape: f32[8,512], index: 7, kind: output, shape index: {}]
  %s8 = sld [smem:[#allocation0]]
  $region84: #{implicit_densenet_forward.1} parent=0
    _
  %s10 = ssub.s32 1, %s8
  %s11 = scalar_select 0, %s10, %s8
  $region1: #{implicit_densenet_forward.1} parent=0
    #allocation2 [shape = 'u8[32768]{0}', space=vmem, size = 0x8000, scoped, tag = 'input window, operand 0']
    #allocation3 [shape = 'u8[16384]{0}', space=vmem, size = 0x4000, scoped, tag = 'output window, operand 0']
    #allocation4 [shape = 's32[2]{0}', space=sflag, size = 0x8, scoped, tag = 'scoped memory for implicit_densenet_forward.1']
    %12 = vsyncpa [#allocation4], 0
    %s13 = scalar_lea.sflag [#allocation4], 1
    %14 = vsyncpa %s13, 0
    loop: start=0, step=1, limit=4
    $region2: #{implicit_densenet_forward.1} parent=1 // loop_pre_header
      _
    $region3: #{implicit_densenet_forward.1} parent=1 // loop_header
      %s16 = sphi 0, %s20
      %p17 = scmp.ge.s32.totalorder %s16, 4
      %s26 = sphi 0, %s28
      %s29 = sphi 0, %s26
      %s30 = sphi 0, %s29
      %s46 = sphi 0, %s30
      %s50 = sphi 0, %s50
      %s52 = sphi 0, %s50
      %s53 = sphi 0, %s52
      %s67 = sphi 0, %s53
      %s71 = sphi 0, %s71
      %s73 = sphi 0, %s71
      %s74 = sphi 0, %s73
      %s88 = sphi 0, %s74
      %s92 = sphi 0, %s92
      %s94 = sphi 0, %s92
      %s95 = sphi 0, %s94
      %s109 = sphi 0, %s95
      %s113 = sphi 0, %s113
      %s115 = sphi 0, %s113
      %s116 = sphi 0, %s115
      %s130 = sphi 0, %s116
      %s134 = sphi 0, %s134
      %s136 = sphi 0, %s134
      %s137 = sphi 0, %s136
      %s151 = sphi 0, %s137
      %s155 = sphi 0, %s155
      %s157 = sphi 0, %s155
      %s158 = sphi 0, %s157
      %s172 = sphi 0, %s158
      %s178 = sphi 0, %s180
      %s181 = sphi 0, %s178
      %s182 = sphi 0, %s181
      %s198 = sphi 0, %s182
    $region4: #{implicit_densenet_forward.1} parent=1 // loop_header_branch
      %19 = sbr.rel (%p17) target = $region8
    $region5: #{implicit_densenet_forward.1} parent=1 // loop_body
      %s21 = ssub.s32 %s16, 1
      %s22 = ssub.s32 %s16, 2
      %s23 = sadd.s32 %s16, 1
      %s24 = ssub.s32 %s16, %s23
      %p25 = scmp.eq.s32.totalorder %s24, 0
      %s27 = sadd.s32 %s26, 1
      %s28 = scalar_select %p25, %s26, %s27
      %p31 = pneg %p25
      %p32 = scmp.eq.s32.totalorder %s16, 1
      %p33 = por %p31, %p32
      %p34 = scmp.ne.s32.totalorder %s26, %s29
      %p35 = scmp.eq.s32.totalorder %s16, 0
      %p36 = por %p34, %p35
      %p37 = scmp.ne.s32.totalorder %s26, %s29
      %p38 = scmp.eq.s32.totalorder %s21, 1
      %p39 = por %p37, %p38
      %p40 = scmp.ne.s32.totalorder %s29, %s30
      %p41 = scmp.eq.s32.totalorder %s21, 0
      %p42 = por %p40, %p41
      %p43 = scmp.ne.s32.totalorder %s29, %s30
      %p44 = scmp.eq.s32.totalorder %s22, 1
      %p45 = por %p43, %p44
      %p47 = scmp.ne.s32.totalorder %s30, %s46
      %p48 = scmp.eq.s32.totalorder %s22, 0
      %p49 = por %p47, %p48
      %s51 = sadd.s32 %s50, 1
      %p54 = scmp.eq.s32.totalorder %s16, 1
      %p55 = scmp.ne.s32.totalorder %s50, %s52
      %p56 = scmp.eq.s32.totalorder %s16, 0
      %p57 = por %p55, %p56
      %p58 = scmp.ne.s32.totalorder %s50, %s52
      %p59 = scmp.eq.s32.totalorder %s21, 1
      %p60 = por %p58, %p59
      %p61 = scmp.ne.s32.totalorder %s52, %s53
      %p62 = scmp.eq.s32.totalorder %s21, 0
      %p63 = por %p61, %p62
      %p64 = scmp.ne.s32.totalorder %s52, %s53
      %p65 = scmp.eq.s32.totalorder %s22, 1
      %p66 = por %p64, %p65
      %p68 = scmp.ne.s32.totalorder %s53, %s67
      %p69 = scmp.eq.s32.totalorder %s22, 0
      %p70 = por %p68, %p69
      %s72 = sadd.s32 %s71, 1
      %p75 = scmp.eq.s32.totalorder %s16, 1
      %p76 = scmp.ne.s32.totalorder %s71, %s73
      %p77 = scmp.eq.s32.totalorder %s16, 0
      %p78 = por %p76, %p77
      %p79 = scmp.ne.s32.totalorder %s71, %s73
      %p80 = scmp.eq.s32.totalorder %s21, 1
      %p81 = por %p79, %p80
      %p82 = scmp.ne.s32.totalorder %s73, %s74
      %p83 = scmp.eq.s32.totalorder %s21, 0
      %p84 = por %p82, %p83
      %p85 = scmp.ne.s32.totalorder %s73, %s74
      %p86 = scmp.eq.s32.totalorder %s22, 1
      %p87 = por %p85, %p86
      %p89 = scmp.ne.s32.totalorder %s74, %s88
      %p90 = scmp.eq.s32.totalorder %s22, 0
      %p91 = por %p89, %p90
      %s93 = sadd.s32 %s92, 1
      %p96 = scmp.eq.s32.totalorder %s16, 1
      %p97 = scmp.ne.s32.totalorder %s92, %s94
      %p98 = scmp.eq.s32.totalorder %s16, 0
      %p99 = por %p97, %p98
      %p100 = scmp.ne.s32.totalorder %s92, %s94
      %p101 = scmp.eq.s32.totalorder %s21, 1
      %p102 = por %p100, %p101
      %p103 = scmp.ne.s32.totalorder %s94, %s95
      %p104 = scmp.eq.s32.totalorder %s21, 0
      %p105 = por %p103, %p104
      %p106 = scmp.ne.s32.totalorder %s94, %s95
      %p107 = scmp.eq.s32.totalorder %s22, 1
      %p108 = por %p106, %p107
      %p110 = scmp.ne.s32.totalorder %s95, %s109
      %p111 = scmp.eq.s32.totalorder %s22, 0
      %p112 = por %p110, %p111
      %s114 = sadd.s32 %s113, 1
      %p117 = scmp.eq.s32.totalorder %s16, 1
      %p118 = scmp.ne.s32.totalorder %s113, %s115
      %p119 = scmp.eq.s32.totalorder %s16, 0
      %p120 = por %p118, %p119
      %p121 = scmp.ne.s32.totalorder %s113, %s115
      %p122 = scmp.eq.s32.totalorder %s21, 1
      %p123 = por %p121, %p122
      %p124 = scmp.ne.s32.totalorder %s115, %s116
      %p125 = scmp.eq.s32.totalorder %s21, 0
      %p126 = por %p124, %p125
      %p127 = scmp.ne.s32.totalorder %s115, %s116
      %p128 = scmp.eq.s32.totalorder %s22, 1
      %p129 = por %p127, %p128
      %p131 = scmp.ne.s32.totalorder %s116, %s130
      %p132 = scmp.eq.s32.totalorder %s22, 0
      %p133 = por %p131, %p132
      %s135 = sadd.s32 %s134, 1
      %p138 = scmp.eq.s32.totalorder %s16, 1
      %p139 = scmp.ne.s32.totalorder %s134, %s136
      %p140 = scmp.eq.s32.totalorder %s16, 0
      %p141 = por %p139, %p140
      %p142 = scmp.ne.s32.totalorder %s134, %s136
      %p143 = scmp.eq.s32.totalorder %s21, 1
      %p144 = por %p142, %p143
      %p145 = scmp.ne.s32.totalorder %s136, %s137
      %p146 = scmp.eq.s32.totalorder %s21, 0
      %p147 = por %p145, %p146
      %p148 = scmp.ne.s32.totalorder %s136, %s137
      %p149 = scmp.eq.s32.totalorder %s22, 1
      %p150 = por %p148, %p149
      %p152 = scmp.ne.s32.totalorder %s137, %s151
      %p153 = scmp.eq.s32.totalorder %s22, 0
      %p154 = por %p152, %p153
      %s156 = sadd.s32 %s155, 1
      %p159 = scmp.eq.s32.totalorder %s16, 1
      %p160 = scmp.ne.s32.totalorder %s155, %s157
      %p161 = scmp.eq.s32.totalorder %s16, 0
      %p162 = por %p160, %p161
      %p163 = scmp.ne.s32.totalorder %s155, %s157
      %p164 = scmp.eq.s32.totalorder %s21, 1
      %p165 = por %p163, %p164
      %p166 = scmp.ne.s32.totalorder %s157, %s158
      %p167 = scmp.eq.s32.totalorder %s21, 0
      %p168 = por %p166, %p167
      %p169 = scmp.ne.s32.totalorder %s157, %s158
      %p170 = scmp.eq.s32.totalorder %s22, 1
      %p171 = por %p169, %p170
      %p173 = scmp.ne.s32.totalorder %s158, %s172
      %p174 = scmp.eq.s32.totalorder %s22, 0
      %p175 = por %p173, %p174
      %s176 = ssub.s32 %s16, %s23
      %p177 = scmp.eq.s32.totalorder %s176, 0
      %s179 = sadd.s32 %s178, 1
      %s180 = scalar_select %p177, %s178, %s179
      %p183 = pneg %p177
      %p184 = scmp.eq.s32.totalorder %s16, 1
      %p185 = por %p183, %p184
      %p186 = scmp.ne.s32.totalorder %s178, %s181
      %p187 = scmp.eq.s32.totalorder %s16, 0
      %p188 = por %p186, %p187
      %p189 = scmp.ne.s32.totalorder %s178, %s181
      %p190 = scmp.eq.s32.totalorder %s21, 1
      %p191 = por %p189, %p190
      %p192 = scmp.ne.s32.totalorder %s181, %s182
      %p193 = scmp.eq.s32.totalorder %s21, 0
      %p194 = por %p192, %p193
      %p195 = scmp.ne.s32.totalorder %s181, %s182
      %p196 = scmp.eq.s32.totalorder %s22, 1
      %p197 = por %p195, %p196
      %p199 = scmp.ne.s32.totalorder %s182, %s198
      %p200 = scmp.eq.s32.totalorder %s22, 0
      %p201 = por %p199, %p200
      %p202 = scmp.le.s32.totalorder 1, %s16
      %p203 = scmp.lt.s32.totalorder %s16, 3
      %p204 = pnand %p202, %p203
      %p205 = pneg %p204
      // Predicated region
      $region9: #{implicit_densenet_forward.1} parent=5 // pred_check
        _
      $region10: #{implicit_densenet_forward.1} parent=5 // pred_check_branch
        %207 = sbr.rel (%p204) target = $region12
      $region11: #{implicit_densenet_forward.1} parent=5 // pred_region
        %s208 = ssub.s32 %s16, 1
        // Predicated region
        $region13: #{implicit_densenet_forward.1} parent=11 // pred_check
          %p209 = pneg %p63
        $region14: #{implicit_densenet_forward.1} parent=11 // pred_check_branch
          %211 = sbr.rel (%p209) target = $region16
        $region15: #{implicit_densenet_forward.1} parent=11 // pred_region
          _
        $region16: #{implicit_densenet_forward.1} parent=11 // pred_fallthru
          _
        // Predicated region
        $region17: #{implicit_densenet_forward.1} parent=11 // pred_check
          %p212 = pneg %p84
        $region18: #{implicit_densenet_forward.1} parent=11 // pred_check_branch
          %214 = sbr.rel (%p212) target = $region20
        $region19: #{implicit_densenet_forward.1} parent=11 // pred_region
          _
        $region20: #{implicit_densenet_forward.1} parent=11 // pred_fallthru
          _
        // Predicated region
        $region21: #{implicit_densenet_forward.1} parent=11 // pred_check
          %p215 = pneg %p105
        $region22: #{implicit_densenet_forward.1} parent=11 // pred_check_branch
          %217 = sbr.rel (%p215) target = $region24
        $region23: #{implicit_densenet_forward.1} parent=11 // pred_region
          _
        $region24: #{implicit_densenet_forward.1} parent=11 // pred_fallthru
          _
        // Predicated region
        $region25: #{implicit_densenet_forward.1} parent=11 // pred_check
          %p218 = pneg %p126
        $region26: #{implicit_densenet_forward.1} parent=11 // pred_check_branch
          %220 = sbr.rel (%p218) target = $region28
        $region27: #{implicit_densenet_forward.1} parent=11 // pred_region
          _
        $region28: #{implicit_densenet_forward.1} parent=11 // pred_fallthru
          _
        // Predicated region
        $region29: #{implicit_densenet_forward.1} parent=11 // pred_check
          %p221 = pneg %p147
        $region30: #{implicit_densenet_forward.1} parent=11 // pred_check_branch
          %223 = sbr.rel (%p221) target = $region32
        $region31: #{implicit_densenet_forward.1} parent=11 // pred_region
          _
        $region32: #{implicit_densenet_forward.1} parent=11 // pred_fallthru
          _
        // Predicated region
        $region33: #{implicit_densenet_forward.1} parent=11 // pred_check
          %p224 = pneg %p168
        $region34: #{implicit_densenet_forward.1} parent=11 // pred_check_branch
          %226 = sbr.rel (%p224) target = $region36
        $region35: #{implicit_densenet_forward.1} parent=11 // pred_region
          _
        $region36: #{implicit_densenet_forward.1} parent=11 // pred_fallthru
          _
      $region12: #{implicit_densenet_forward.1} parent=5 // pred_fallthru
        _
      %p227 = scmp.lt.s32.totalorder %s16, 2
      // Predicated region
      $region37: #{implicit_densenet_forward.1} parent=5 // pred_check
        %p228 = pneg %p227
      $region38: #{implicit_densenet_forward.1} parent=5 // pred_check_branch
        %230 = sbr.rel (%p228) target = $region40
      $region39: #{implicit_densenet_forward.1} parent=5 // pred_region
        // Predicated region
        $region41: #{implicit_densenet_forward.1} parent=39 // pred_check
          %p231 = pneg %p36
        $region42: #{implicit_densenet_forward.1} parent=39 // pred_check_branch
          %233 = sbr.rel (%p231) target = $region44
        $region43: #{implicit_densenet_forward.1} parent=39 // pred_region
          %s234 = sand.u32 %s26, 1
          %s235 = sand.u32 %s26, 1
          %s236 = smul.addr %s235, 32
          %s237 = scalar_lea.vmem [#allocation2], %s236
          %s238 = smul.u32 2, %s16
          %s239 = smul.addr %s238, 8
          %s240 = scalar_lea.vmem %s0, %s239
          // Predicated region
          $region45: #{implicit_densenet_forward.1} parent=43 // pred_check
            _
          $region46: #{implicit_densenet_forward.1} parent=43 // pred_check_branch
            %242 = sbr.rel (0) target = $region48
          $region47: #{implicit_densenet_forward.1} parent=43 // pred_region
            // Predicated region
            $region49: #{implicit_densenet_forward.1} parent=47 // pred_check
              _
            $region50: #{implicit_densenet_forward.1} parent=47 // pred_check_branch
              %244 = sbr.rel (0) target = $region52
            $region51: #{implicit_densenet_forward.1} parent=47 // pred_region
              loop: start=0, step=1, limit=1
              $region53: #{implicit_densenet_forward.1} parent=51 // loop_pre_header
                _
              $region54: #{implicit_densenet_forward.1} parent=51 // loop_header
                %s246 = sphi 0, %s250
                %p247 = scmp.ge.s32.totalorder %s246, 1
                %s251 = sphi %s240, %s240
                %s252 = sphi %s237, %s237
              $region55: #{implicit_densenet_forward.1} parent=51 // loop_header_branch
                %249 = sbr.rel (%p247) target = $region59
              $region56: #{implicit_densenet_forward.1} parent=51 // loop_body
                %v253 = vld [vmem:[%s251] sm:$0xff]
                %254 = vst [vmem:[%s252] sm:$0xff] %v253
                %v255 = vld [vmem:[%s251 + $0x8] sm:$0xff]
                %256 = vst [vmem:[%s252 + $0x8] sm:$0xff] %v255
                %v257 = vld [vmem:[%s251 + $0x20] sm:$0xff]
                %258 = vst [vmem:[%s252 + $0x10] sm:$0xff] %v257
                %v259 = vld [vmem:[%s251 + $0x28] sm:$0xff]
                %260 = vst [vmem:[%s252 + $0x18] sm:$0xff] %v259
              $region57: #{implicit_densenet_forward.1} parent=51 // loop_footer
                %s250 = sadd.s32 1, %s246
              $region58: #{implicit_densenet_forward.1} parent=51 // loop_footer_branch
                %245 = sbr.rel target = $region54
              $region59: #{implicit_densenet_forward.1} parent=51 // loop_exit
                _
            $region52: #{implicit_densenet_forward.1} parent=47 // pred_fallthru
              _
            // Predicated region
            $region60: #{implicit_densenet_forward.1} parent=47 // pred_check
              _
            $region61: #{implicit_densenet_forward.1} parent=47 // pred_check_branch
              %262 = sbr.rel target = $region63
            $region62: #{implicit_densenet_forward.1} parent=47 // pred_region
              _
            $region63: #{implicit_densenet_forward.1} parent=47 // pred_fallthru
              _
          $region48: #{implicit_densenet_forward.1} parent=43 // pred_fallthru
            _
          %263 = vnop
        $region44: #{implicit_densenet_forward.1} parent=39 // pred_fallthru
          _
      $region40: #{implicit_densenet_forward.1} parent=5 // pred_fallthru
        _
      %p264 = scmp.le.s32.totalorder 1, %s16
      %p265 = scmp.lt.s32.totalorder %s16, 3
      %p266 = pnand %p264, %p265
      %p267 = pneg %p266
      // Predicated region
      $region64: #{implicit_densenet_forward.1} parent=5 // pred_check
        _
      $region65: #{implicit_densenet_forward.1} parent=5 // pred_check_branch
        %269 = sbr.rel (%p266) target = $region67
      $region66: #{implicit_densenet_forward.1} parent=5 // pred_region
        %s270 = ssub.s32 %s16, 1
        %s271 = sand.u32 %s29, 1
        %s272 = sand.u32 %s29, 1
        %s273 = smul.addr %s272, 32
        %s274 = scalar_lea.vmem [#allocation2], %s273
        // Predicated region
        $region68: #{implicit_densenet_forward.1} parent=66 // pred_check
          %p275 = pneg %p42
        $region69: #{implicit_densenet_forward.1} parent=66 // pred_check_branch
          %277 = sbr.rel (%p275) target = $region71
        $region70: #{implicit_densenet_forward.1} parent=66 // pred_region
          _
        $region71: #{implicit_densenet_forward.1} parent=66 // pred_fallthru
          _
        %s278 = sand.u32 %s29, 1
        %s279 = sand.u32 %s29, 1
        %s280 = smul.addr %s279, 32
        %s281 = scalar_lea.vmem [#allocation2], %s280
        %p282 = pneg %p42
        %p283 = pneg %p39
        %p284 = pneg %p63
        %p285 = pneg %p60
        %p286 = pneg %p84
        %p287 = pneg %p81
        %p288 = pneg %p105
        %p289 = pneg %p102
        %p290 = pneg %p126
        %p291 = pneg %p123
        %p292 = pneg %p147
        %p293 = pneg %p144
        %p294 = pneg %p168
        %p295 = pneg %p165
        %p296 = pneg %p194
        %p297 = pneg %p191
        %s298 = sand.u32 %s181, 1
        %s299 = scalar_lea.sflag [#allocation4], %s298
        %s300 = sand.u32 %s181, 1
        %s301 = smul.addr %s300, 16
        %s302 = scalar_lea.vmem [#allocation3], %s301
        %s303 = smul.u32 2, %s21
        %s304 = smul.u32 2, %s21
        %v305 = vld [vmem:[%s1] sm:$0xff]
        %v306 = vld [vmem:[%s1 + $0x8] sm:$0xff]
        %v307 = vld [vmem:[%s1 + $0x10] sm:$0xff]
        %v308 = vld [vmem:[%s1 + $0x18] sm:$0xff]
        %v309 = vld [vmem:[%s274] sm:$0xff]
        %v310 = vld [vmem:[%s274 + $0x8] sm:$0xff]
        %v311 = vld [vmem:[%s274 + $0x10] sm:$0xff]
        %v312 = vld [vmem:[%s274 + $0x18] sm:$0xff]
        %v313 = vld [vmem:[%s2] sm:$0xff]
        %v314 = vld [vmem:[%s2 + $0x8] sm:$0xff]
        %v315 = vld [vmem:[%s2 + $0x10] sm:$0xff]
        %v316 = vld [vmem:[%s2 + $0x18] sm:$0xff]
        %318 = vset.pattern.permute.xlu0 0
        %319 = vperm.xlu0 %318, %v313
        %v320 = vpop.permute.xlu0 %319
        %323 = vset.pattern.permute.xlu0 0
        %324 = vperm.xlu0 %323, %v314
        %v325 = vpop.permute.xlu0 %324
        %328 = vset.pattern.permute.xlu0 0
        %329 = vperm.xlu0 %328, %v315
        %v330 = vpop.permute.xlu0 %329
        %333 = vset.pattern.permute.xlu0 0
        %334 = vperm.xlu0 %333, %v316
        %v335 = vpop.permute.xlu0 %334
        %vm337 = vcmask 130048
        %v339 = vsel %vm337, %v305, 0
        %v342 = vsel %vm337, %v306, 0
        %v345 = vsel %vm337, %v307, 0
        %v348 = vsel %vm337, %v308, 0
        %350 = vmatprep.subr.mxu0 %v310
        %351 = vmatpush1.msra.mxu0 %v309
        %352 = vmatprep.subr.mxu0 %v312
        %353 = vmatpush1.msra.mxu0 %v311
        %354 = vmatprep.subr.mxu0 0.0
        %355 = vmatpush1.msra.mxu0 0.0
        %356 = vmatprep.subr.mxu0 0.0
        %357 = vmatpush1.msra.mxu0 0.0
        %358 = vmatprep.subr.mxu0 0.0
        %359 = vmatpush1.msra.mxu0 0.0
        %360 = vmatprep.subr.mxu0 0.0
        %361 = vmatpush1.msra.mxu0 0.0
        %362 = vmatprep.subr.mxu0 0.0
        %363 = vmatpush1.msra.mxu0 0.0
        %364 = vmatprep.subr.mxu0 0.0
        %365 = vmatpush1.msra.mxu0 0.0
        %366 = vmatprep.subr.mxu0 0.0
        %367 = vmatpush1.msra.mxu0 0.0
        %368 = vmatprep.subr.mxu0 0.0
        %369 = vmatpush1.msra.mxu0 0.0
        %370 = vmatprep.subr.mxu0 0.0
        %371 = vmatpush1.msra.mxu0 0.0
        %372 = vmatprep.subr.mxu0 0.0
        %373 = vmatpush1.msra.mxu0 0.0
        %374 = vmatprep.subr.mxu0 0.0
        %375 = vmatpush1.msra.mxu0 0.0
        %376 = vmatprep.subr.mxu0 0.0
        %377 = vmatpush1.msra.mxu0 0.0
        %378 = vmatprep.subr.mxu0 0.0
        %379 = vmatpush1.msra.mxu0 0.0
        %380 = vmatprep.subr.mxu0 0.0
        %381 = vmatpush1.msra.mxu0 0.0
        %382 = vmatprep.subr.mxu0 0.0
        %383 = vmatpush1.msra.mxu0 0.0
        %384 = vmatprep.subr.mxu0 0.0
        %385 = vmatpush1.msra.mxu0 0.0
        %386 = vmatprep.subr.mxu0 0.0
        %387 = vmatpush1.msra.mxu0 0.0
        %388 = vmatprep.subr.mxu0 0.0
        %389 = vmatpush1.msra.mxu0 0.0
        %390 = vmatprep.subr.mxu0 0.0
        %391 = vmatpush1.msra.mxu0 0.0
        %392 = vmatprep.subr.mxu0 0.0
        %393 = vmatpush1.msra.mxu0 0.0
        %394 = vmatprep.subr.mxu0 0.0
        %395 = vmatpush1.msra.mxu0 0.0
        %396 = vmatprep.subr.mxu0 0.0
        %397 = vmatpush1.msra.mxu0 0.0
        %398 = vmatprep.subr.mxu0 0.0
        %399 = vmatpush1.msra.mxu0 0.0
        %400 = vmatprep.subr.mxu0 0.0
        %401 = vmatpush1.msra.mxu0 0.0
        %402 = vmatprep.subr.mxu0 0.0
        %403 = vmatpush1.msra.mxu0 0.0
        %404 = vmatprep.subr.mxu0 0.0
        %405 = vmatpush1.msra.mxu0 0.0
        %406 = vmatprep.subr.mxu0 0.0
        %407 = vmatpush1.msra.mxu0 0.0
        %408 = vmatprep.subr.mxu0 0.0
        %409 = vmatpush1.msra.mxu0 0.0
        %410 = vmatprep.subr.mxu0 0.0
        %411 = vmatpush1.msra.mxu0 0.0
        %412 = vmatprep.subr.mxu0 0.0
        %413 = vmatpush1.msra.mxu0 0.0
        %414 = vmatprep.mubr.f32.mxu0 0.0
        %415 = vmatmul.mubr.f32.gmra.mrb[0].mxu0 %v339
        %v416 = vpop.f32.mrb[0].mxu0
        %v417 = vadd.f32 %v320, %v416
        %v418 = vpop.f32.mrb[0].mxu0
        %v419 = vadd.f32 %v320, %v418
        %420 = vmatprep.mubr.f32.mxu0 0.0
        %421 = vmatmul.mubr.f32.gmra.mrb[0].mxu0 %v342
        %v422 = vpop.f32.mrb[0].mxu0
        %v423 = vadd.f32 %v325, %v422
        %v424 = vpop.f32.mrb[0].mxu0
        %v425 = vadd.f32 %v325, %v424
        %426 = vmatprep.mubr.f32.mxu0 0.0
        %427 = vmatmul.mubr.f32.gmra.mrb[0].mxu0 %v345
        %v428 = vpop.f32.mrb[0].mxu0
        %v429 = vadd.f32 %v330, %v428
        %v430 = vpop.f32.mrb[0].mxu0
        %v431 = vadd.f32 %v330, %v430
        %432 = vmatprep.mubr.f32.mxu0 0.0
        %433 = vmatmul.mubr.f32.gmra.mrb[0].mxu0 %v348
        %v434 = vpop.f32.mrb[0].mxu0
        %v435 = vadd.f32 %v335, %v434
        %v436 = vpop.f32.mrb[0].mxu0
        %v437 = vadd.f32 %v335, %v436
        %438 = vdwg.mxu0
        %v439 = vmax.f32 %v417, 0.0
        %v440 = vmax.f32 %v419, 0.0
        %v441 = vmax.f32 %v423, 0.0
        %v442 = vmax.f32 %v425, 0.0
        %v443 = vmax.f32 %v429, 0.0
        %v444 = vmax.f32 %v431, 0.0
        %v445 = vmax.f32 %v435, 0.0
        %v446 = vmax.f32 %v437, 0.0
        %v447 = vld [vmem:[%s3] sm:$0xff]
        %v448 = vld [vmem:[%s3 + $0x8] sm:$0xff]
        %v449 = vld [vmem:[%s3 + $0x10] sm:$0xff]
        %v450 = vld [vmem:[%s3 + $0x18] sm:$0xff]
        %v451 = vld [vmem:[%s4] sm:$0xff]
        %v452 = vld [vmem:[%s4 + $0x8] sm:$0xff]
        %v453 = vld [vmem:[%s4 + $0x10] sm:$0xff]
        %v454 = vld [vmem:[%s4 + $0x18] sm:$0xff]
        %456 = vset.pattern.permute.xlu0 0
        %457 = vperm.xlu0 %456, %v451
        %v458 = vpop.permute.xlu0 %457
        %461 = vset.pattern.permute.xlu0 0
        %462 = vperm.xlu0 %461, %v452
        %v463 = vpop.permute.xlu0 %462
        %466 = vset.pattern.permute.xlu0 0
        %467 = vperm.xlu0 %466, %v453
        %v468 = vpop.permute.xlu0 %467
        %471 = vset.pattern.permute.xlu0 0
        %472 = vperm.xlu0 %471, %v454
        %v473 = vpop.permute.xlu0 %472
        %vm475 = vcmask 261120
        %v477 = vsel %vm475, %v447, 0
        %v480 = vsel %vm475, %v448, 0
        %v483 = vsel %vm475, %v449, 0
        %v486 = vsel %vm475, %v450, 0
        %488 = vmatprep.subr.mxu0 %v440
        %489 = vmatpush1.msra.mxu0 %v439
        %490 = vmatprep.subr.mxu0 %v442
        %491 = vmatpush1.msra.mxu0 %v441
        %492 = vmatprep.subr.mxu0 %v444
        %493 = vmatpush1.msra.mxu0 %v443
        %494 = vmatprep.subr.mxu0 %v446
        %495 = vmatpush1.msra.mxu0 %v445
        %496 = vmatprep.subr.mxu0 0.0
        %497 = vmatpush1.msra.mxu0 0.0
        %498 = vmatprep.subr.mxu0 0.0
        %499 = vmatpush1.msra.mxu0 0.0
        %500 = vmatprep.subr.mxu0 0.0
        %501 = vmatpush1.msra.mxu0 0.0
        %502 = vmatprep.subr.mxu0 0.0
        %503 = vmatpush1.msra.mxu0 0.0
        %504 = vmatprep.subr.mxu0 0.0
        %505 = vmatpush1.msra.mxu0 0.0
        %506 = vmatprep.subr.mxu0 0.0
        %507 = vmatpush1.msra.mxu0 0.0
        %508 = vmatprep.subr.mxu0 0.0
        %509 = vmatpush1.msra.mxu0 0.0
        %510 = vmatprep.subr.mxu0 0.0
        %511 = vmatpush1.msra.mxu0 0.0
        %512 = vmatprep.subr.mxu0 0.0
        %513 = vmatpush1.msra.mxu0 0.0
        %514 = vmatprep.subr.mxu0 0.0
        %515 = vmatpush1.msra.mxu0 0.0
        %516 = vmatprep.subr.mxu0 0.0
        %517 = vmatpush1.msra.mxu0 0.0
        %518 = vmatprep.subr.mxu0 0.0
        %519 = vmatpush1.msra.mxu0 0.0
        %520 = vmatprep.subr.mxu0 0.0
        %521 = vmatpush1.msra.mxu0 0.0
        %522 = vmatprep.subr.mxu0 0.0
        %523 = vmatpush1.msra.mxu0 0.0
        %524 = vmatprep.subr.mxu0 0.0
        %525 = vmatpush1.msra.mxu0 0.0
        %526 = vmatprep.subr.mxu0 0.0
        %527 = vmatpush1.msra.mxu0 0.0
        %528 = vmatprep.subr.mxu0 0.0
        %529 = vmatpush1.msra.mxu0 0.0
        %530 = vmatprep.subr.mxu0 0.0
        %531 = vmatpush1.msra.mxu0 0.0
        %532 = vmatprep.subr.mxu0 0.0
        %533 = vmatpush1.msra.mxu0 0.0
        %534 = vmatprep.subr.mxu0 0.0
        %535 = vmatpush1.msra.mxu0 0.0
        %536 = vmatprep.subr.mxu0 0.0
        %537 = vmatpush1.msra.mxu0 0.0
        %538 = vmatprep.subr.mxu0 0.0
        %539 = vmatpush1.msra.mxu0 0.0
        %540 = vmatprep.subr.mxu0 0.0
        %541 = vmatpush1.msra.mxu0 0.0
        %542 = vmatprep.subr.mxu0 0.0
        %543 = vmatpush1.msra.mxu0 0.0
        %544 = vmatprep.subr.mxu0 0.0
        %545 = vmatpush1.msra.mxu0 0.0
        %546 = vmatprep.subr.mxu0 0.0
        %547 = vmatpush1.msra.mxu0 0.0
        %548 = vmatprep.subr.mxu0 0.0
        %549 = vmatpush1.msra.mxu0 0.0
        %550 = vmatprep.subr.mxu0 0.0
        %551 = vmatpush1.msra.mxu0 0.0
        %552 = vmatprep.mubr.f32.mxu0 0.0
        %553 = vmatmul.mubr.f32.gmra.mrb[0].mxu0 %v477
        %v554 = vpop.f32.mrb[0].mxu0
        %v555 = vadd.f32 %v458, %v554
        %v556 = vpop.f32.mrb[0].mxu0
        %v557 = vadd.f32 %v458, %v556
        %558 = vmatprep.mubr.f32.mxu0 0.0
        %559 = vmatmul.mubr.f32.gmra.mrb[0].mxu0 %v480
        %v560 = vpop.f32.mrb[0].mxu0
        %v561 = vadd.f32 %v463, %v560
        %v562 = vpop.f32.mrb[0].mxu0
        %v563 = vadd.f32 %v463, %v562
        %564 = vmatprep.mubr.f32.mxu0 0.0
        %565 = vmatmul.mubr.f32.gmra.mrb[0].mxu0 %v483
        %v566 = vpop.f32.mrb[0].mxu0
        %v567 = vadd.f32 %v468, %v566
        %v568 = vpop.f32.mrb[0].mxu0
        %v569 = vadd.f32 %v468, %v568
        %570 = vmatprep.mubr.f32.mxu0 0.0
        %571 = vmatmul.mubr.f32.gmra.mrb[0].mxu0 %v486
        %v572 = vpop.f32.mrb[0].mxu0
        %v573 = vadd.f32 %v473, %v572
        %v574 = vpop.f32.mrb[0].mxu0
        %v575 = vadd.f32 %v473, %v574
        %576 = vdwg.mxu0
        %v577 = vmax.f32 %v555, 0.0
        %v578 = vmax.f32 %v557, 0.0
        %v579 = vmax.f32 %v561, 0.0
        %v580 = vmax.f32 %v563, 0.0
        %v581 = vmax.f32 %v567, 0.0
        %v582 = vmax.f32 %v569, 0.0
        %v583 = vmax.f32 %v573, 0.0
        %v584 = vmax.f32 %v575, 0.0
        %585 = vmatprep.subr.mxu0 %v578
        %586 = vmatpush1.msra.mxu0 %v577
        %587 = vmatprep.subr.mxu0 %v580
        %588 = vmatpush1.msra.mxu0 %v579
        %589 = vmatprep.subr.mxu0 %v582
        %590 = vmatpush1.msra.mxu0 %v581
        %591 = vmatprep.subr.mxu0 %v584
        %592 = vmatpush1.msra.mxu0 %v583
        %593 = vmatprep.subr.mxu0 0.0
        %594 = vmatpush1.msra.mxu0 0.0
        %595 = vmatprep.subr.mxu0 0.0
        %596 = vmatpush1.msra.mxu0 0.0
        %597 = vmatprep.subr.mxu0 0.0
        %598 = vmatpush1.msra.mxu0 0.0
        %599 = vmatprep.subr.mxu0 0.0
        %600 = vmatpush1.msra.mxu0 0.0
        %601 = vmatprep.subr.mxu0 0.0
        %602 = vmatpush1.msra.mxu0 0.0
        %603 = vmatprep.subr.mxu0 0.0
        %604 = vmatpush1.msra.mxu0 0.0
        %605 = vmatprep.subr.mxu0 0.0
        %606 = vmatpush1.msra.mxu0 0.0
        %607 = vmatprep.subr.mxu0 0.0
        %608 = vmatpush1.msra.mxu0 0.0
        %609 = vmatprep.subr.mxu0 0.0
        %610 = vmatpush1.msra.mxu0 0.0
        %611 = vmatprep.subr.mxu0 0.0
        %612 = vmatpush1.msra.mxu0 0.0
        %613 = vmatprep.subr.mxu0 0.0
        %614 = vmatpush1.msra.mxu0 0.0
        %615 = vmatprep.subr.mxu0 0.0
        %616 = vmatpush1.msra.mxu0 0.0
        %617 = vmatprep.subr.mxu0 0.0
        %618 = vmatpush1.msra.mxu0 0.0
        %619 = vmatprep.subr.mxu0 0.0
        %620 = vmatpush1.msra.mxu0 0.0
        %621 = vmatprep.subr.mxu0 0.0
        %622 = vmatpush1.msra.mxu0 0.0
        %623 = vmatprep.subr.mxu0 0.0
        %624 = vmatpush1.msra.mxu0 0.0
        %625 = vmatprep.subr.mxu0 0.0
        %626 = vmatpush1.msra.mxu0 0.0
        %627 = vmatprep.subr.mxu0 0.0
        %628 = vmatpush1.msra.mxu0 0.0
        %629 = vmatprep.subr.mxu0 0.0
        %630 = vmatpush1.msra.mxu0 0.0
        %631 = vmatprep.subr.mxu0 0.0
        %632 = vmatpush1.msra.mxu0 0.0
        %633 = vmatprep.subr.mxu0 0.0
        %634 = vmatpush1.msra.mxu0 0.0
        %635 = vmatprep.subr.mxu0 0.0
        %636 = vmatpush1.msra.mxu0 0.0
        %637 = vmatprep.subr.mxu0 0.0
        %638 = vmatpush1.msra.mxu0 0.0
        %639 = vmatprep.subr.mxu0 0.0
        %640 = vmatpush1.msra.mxu0 0.0
        %641 = vmatprep.subr.mxu0 0.0
        %642 = vmatpush1.msra.mxu0 0.0
        %643 = vmatprep.subr.mxu0 0.0
        %644 = vmatpush1.msra.mxu0 0.0
        %645 = vmatprep.subr.mxu0 0.0
        %646 = vmatpush1.msra.mxu0 0.0
        %647 = vmatprep.subr.mxu0 0.0
        %648 = vmatpush1.msra.mxu0 0.0
        %649 = vmatprep.mubr.f32.mxu0 0.0
        %650 = vmatmul.mubr.f32.gmra.mrb[0].mxu0 %v477
        %v651 = vpop.f32.mrb[0].mxu0
        %v652 = vadd.f32 %v458, %v651
        %v653 = vpop.f32.mrb[0].mxu0
        %v654 = vadd.f32 %v458, %v653
        %655 = vmatprep.mubr.f32.mxu0 0.0
        %656 = vmatmul.mubr.f32.gmra.mrb[0].mxu0 %v480
        %v657 = vpop.f32.mrb[0].mxu0
        %v658 = vadd.f32 %v463, %v657
        %v659 = vpop.f32.mrb[0].mxu0
        %v660 = vadd.f32 %v463, %v659
        %661 = vmatprep.mubr.f32.mxu0 0.0
        %662 = vmatmul.mubr.f32.gmra.mrb[0].mxu0 %v483
        %v663 = vpop.f32.mrb[0].mxu0
        %v664 = vadd.f32 %v468, %v663
        %v665 = vpop.f32.mrb[0].mxu0
        %v666 = vadd.f32 %v468, %v665
        %667 = vmatprep.mubr.f32.mxu0 0.0
        %668 = vmatmul.mubr.f32.gmra.mrb[0].mxu0 %v486
        %v669 = vpop.f32.mrb[0].mxu0
        %v670 = vadd.f32 %v473, %v669
        %v671 = vpop.f32.mrb[0].mxu0
        %v672 = vadd.f32 %v473, %v671
        %673 = vdwg.mxu0
        %v674 = vmax.f32 %v652, 0.0
        %v675 = vmax.f32 %v654, 0.0
        %v676 = vmax.f32 %v658, 0.0
        %v677 = vmax.f32 %v660, 0.0
        %v678 = vmax.f32 %v664, 0.0
        %v679 = vmax.f32 %v666, 0.0
        %v680 = vmax.f32 %v670, 0.0
        %v681 = vmax.f32 %v672, 0.0
        %s682 = scalar_lea.vmem %s3, 32
        %v683 = vld [vmem:[%s682] sm:$0xff]
        %v684 = vld [vmem:[%s682 + $0x8] sm:$0xff]
        %v685 = vld [vmem:[%s682 + $0x10] sm:$0xff]
        %v686 = vld [vmem:[%s682 + $0x18] sm:$0xff]
        %s687 = scalar_lea.vmem %s4, 32
        %v688 = vld [vmem:[%s687] sm:$0xff]
        %v689 = vld [vmem:[%s687 + $0x8] sm:$0xff]
        %v690 = vld [vmem:[%s687 + $0x10] sm:$0xff]
        %v691 = vld [vmem:[%s687 + $0x18] sm:$0xff]
        %693 = vset.pattern.permute.xlu0 0
        %694 = vperm.xlu0 %693, %v688
        %v695 = vpop.permute.xlu0 %694
        %698 = vset.pattern.permute.xlu0 0
        %699 = vperm.xlu0 %698, %v689
        %v700 = vpop.permute.xlu0 %699
        %703 = vset.pattern.permute.xlu0 0
        %704 = vperm.xlu0 %703, %v690
        %v705 = vpop.permute.xlu0 %704
        %708 = vset.pattern.permute.xlu0 0
        %709 = vperm.xlu0 %708, %v691
        %v710 = vpop.permute.xlu0 %709
        %v713 = vsel %vm475, %v683, 0
        %v716 = vsel %vm475, %v684, 0
        %v719 = vsel %vm475, %v685, 0
        %v722 = vsel %vm475, %v686, 0
        %724 = vmatprep.subr.mxu0 %v675
        %725 = vmatpush1.msra.mxu0 %v674
        %726 = vmatprep.subr.mxu0 %v677
        %727 = vmatpush1.msra.mxu0 %v676
        %728 = vmatprep.subr.mxu0 %v679
        %729 = vmatpush1.msra.mxu0 %v678
        %730 = vmatprep.subr.mxu0 %v681
        %731 = vmatpush1.msra.mxu0 %v680
        %732 = vmatprep.subr.mxu0 0.0
        %733 = vmatpush1.msra.mxu0 0.0
        %734 = vmatprep.subr.mxu0 0.0
        %735 = vmatpush1.msra.mxu0 0.0
        %736 = vmatprep.subr.mxu0 0.0
        %737 = vmatpush1.msra.mxu0 0.0
        %738 = vmatprep.subr.mxu0 0.0
        %739 = vmatpush1.msra.mxu0 0.0
        %740 = vmatprep.subr.mxu0 0.0
        %741 = vmatpush1.msra.mxu0 0.0
        %742 = vmatprep.subr.mxu0 0.0
        %743 = vmatpush1.msra.mxu0 0.0
        %744 = vmatprep.subr.mxu0 0.0
        %745 = vmatpush1.msra.mxu0 0.0
        %746 = vmatprep.subr.mxu0 0.0
        %747 = vmatpush1.msra.mxu0 0.0
        %748 = vmatprep.subr.mxu0 0.0
        %749 = vmatpush1.msra.mxu0 0.0
        %750 = vmatprep.subr.mxu0 0.0
        %751 = vmatpush1.msra.mxu0 0.0
        %752 = vmatprep.subr.mxu0 0.0
        %753 = vmatpush1.msra.mxu0 0.0
        %754 = vmatprep.subr.mxu0 0.0
        %755 = vmatpush1.msra.mxu0 0.0
        %756 = vmatprep.subr.mxu0 0.0
        %757 = vmatpush1.msra.mxu0 0.0
        %758 = vmatprep.subr.mxu0 0.0
        %759 = vmatpush1.msra.mxu0 0.0
        %760 = vmatprep.subr.mxu0 0.0
        %761 = vmatpush1.msra.mxu0 0.0
        %762 = vmatprep.subr.mxu0 0.0
        %763 = vmatpush1.msra.mxu0 0.0
        %764 = vmatprep.subr.mxu0 0.0
        %765 = vmatpush1.msra.mxu0 0.0
        %766 = vmatprep.subr.mxu0 0.0
        %767 = vmatpush1.msra.mxu0 0.0
        %768 = vmatprep.subr.mxu0 0.0
        %769 = vmatpush1.msra.mxu0 0.0
        %770 = vmatprep.subr.mxu0 0.0
        %771 = vmatpush1.msra.mxu0 0.0
        %772 = vmatprep.subr.mxu0 0.0
        %773 = vmatpush1.msra.mxu0 0.0
        %774 = vmatprep.subr.mxu0 0.0
        %775 = vmatpush1.msra.mxu0 0.0
        %776 = vmatprep.subr.mxu0 0.0
        %777 = vmatpush1.msra.mxu0 0.0
        %778 = vmatprep.subr.mxu0 0.0
        %779 = vmatpush1.msra.mxu0 0.0
        %780 = vmatprep.subr.mxu0 0.0
        %781 = vmatpush1.msra.mxu0 0.0
        %782 = vmatprep.subr.mxu0 0.0
        %783 = vmatpush1.msra.mxu0 0.0
        %784 = vmatprep.subr.mxu0 0.0
        %785 = vmatpush1.msra.mxu0 0.0
        %786 = vmatprep.subr.mxu0 0.0
        %787 = vmatpush1.msra.mxu0 0.0
        %788 = vmatprep.mubr.f32.mxu0 0.0
        %789 = vmatmul.mubr.f32.gmra.mrb[0].mxu0 %v713
        %v790 = vpop.f32.mrb[0].mxu0
        %v791 = vadd.f32 %v695, %v790
        %v792 = vpop.f32.mrb[0].mxu0
        %v793 = vadd.f32 %v695, %v792
        %794 = vmatprep.mubr.f32.mxu0 0.0
        %795 = vmatmul.mubr.f32.gmra.mrb[0].mxu0 %v716
        %v796 = vpop.f32.mrb[0].mxu0
        %v797 = vadd.f32 %v700, %v796
        %v798 = vpop.f32.mrb[0].mxu0
        %v799 = vadd.f32 %v700, %v798
        %800 = vmatprep.mubr.f32.mxu0 0.0
        %801 = vmatmul.mubr.f32.gmra.mrb[0].mxu0 %v719
        %v802 = vpop.f32.mrb[0].mxu0
        %v803 = vadd.f32 %v705, %v802
        %v804 = vpop.f32.mrb[0].mxu0
        %v805 = vadd.f32 %v705, %v804
        %806 = vmatprep.mubr.f32.mxu0 0.0
        %807 = vmatmul.mubr.f32.gmra.mrb[0].mxu0 %v722
        %v808 = vpop.f32.mrb[0].mxu0
        %v809 = vadd.f32 %v710, %v808
        %v810 = vpop.f32.mrb[0].mxu0
        %v811 = vadd.f32 %v710, %v810
        %812 = vdwg.mxu0
        %v813 = vmax.f32 %v791, 0.0
        %v814 = vmax.f32 %v793, 0.0
        %v815 = vmax.f32 %v797, 0.0
        %v816 = vmax.f32 %v799, 0.0
        %v817 = vmax.f32 %v803, 0.0
        %v818 = vmax.f32 %v805, 0.0
        %v819 = vmax.f32 %v809, 0.0
        %v820 = vmax.f32 %v811, 0.0
        %821 = vmatprep.subr.mxu0 %v814
        %822 = vmatpush1.msra.mxu0 %v813
        %823 = vmatprep.subr.mxu0 %v816
        %824 = vmatpush1.msra.mxu0 %v815
        %825 = vmatprep.subr.mxu0 %v818
        %826 = vmatpush1.msra.mxu0 %v817
        %827 = vmatprep.subr.mxu0 %v820
        %828 = vmatpush1.msra.mxu0 %v819
        %829 = vmatprep.subr.mxu0 0.0
        %830 = vmatpush1.msra.mxu0 0.0
        %831 = vmatprep.subr.mxu0 0.0
        %832 = vmatpush1.msra.mxu0 0.0
        %833 = vmatprep.subr.mxu0 0.0
        %834 = vmatpush1.msra.mxu0 0.0
        %835 = vmatprep.subr.mxu0 0.0
        %836 = vmatpush1.msra.mxu0 0.0
        %837 = vmatprep.subr.mxu0 0.0
        %838 = vmatpush1.msra.mxu0 0.0
        %839 = vmatprep.subr.mxu0 0.0
        %840 = vmatpush1.msra.mxu0 0.0
        %841 = vmatprep.subr.mxu0 0.0
        %842 = vmatpush1.msra.mxu0 0.0
        %843 = vmatprep.subr.mxu0 0.0
        %844 = vmatpush1.msra.mxu0 0.0
        %845 = vmatprep.subr.mxu0 0.0
        %846 = vmatpush1.msra.mxu0 0.0
        %847 = vmatprep.subr.mxu0 0.0
        %848 = vmatpush1.msra.mxu0 0.0
        %849 = vmatprep.subr.mxu0 0.0
        %850 = vmatpush1.msra.mxu0 0.0
        %851 = vmatprep.subr.mxu0 0.0
        %852 = vmatpush1.msra.mxu0 0.0
        %853 = vmatprep.subr.mxu0 0.0
        %854 = vmatpush1.msra.mxu0 0.0
        %855 = vmatprep.subr.mxu0 0.0
        %856 = vmatpush1.msra.mxu0 0.0
        %857 = vmatprep.subr.mxu0 0.0
        %858 = vmatpush1.msra.mxu0 0.0
        %859 = vmatprep.subr.mxu0 0.0
        %860 = vmatpush1.msra.mxu0 0.0
        %861 = vmatprep.subr.mxu0 0.0
        %862 = vmatpush1.msra.mxu0 0.0
        %863 = vmatprep.subr.mxu0 0.0
        %864 = vmatpush1.msra.mxu0 0.0
        %865 = vmatprep.subr.mxu0 0.0
        %866 = vmatpush1.msra.mxu0 0.0
        %867 = vmatprep.subr.mxu0 0.0
        %868 = vmatpush1.msra.mxu0 0.0
        %869 = vmatprep.subr.mxu0 0.0
        %870 = vmatpush1.msra.mxu0 0.0
        %871 = vmatprep.subr.mxu0 0.0
        %872 = vmatpush1.msra.mxu0 0.0
        %873 = vmatprep.subr.mxu0 0.0
        %874 = vmatpush1.msra.mxu0 0.0
        %875 = vmatprep.subr.mxu0 0.0
        %876 = vmatpush1.msra.mxu0 0.0
        %877 = vmatprep.subr.mxu0 0.0
        %878 = vmatpush1.msra.mxu0 0.0
        %879 = vmatprep.subr.mxu0 0.0
        %880 = vmatpush1.msra.mxu0 0.0
        %881 = vmatprep.subr.mxu0 0.0
        %882 = vmatpush1.msra.mxu0 0.0
        %883 = vmatprep.subr.mxu0 0.0
        %884 = vmatpush1.msra.mxu0 0.0
        %885 = vmatprep.mubr.f32.mxu0 0.0
        %886 = vmatmul.mubr.f32.gmra.mrb[0].mxu0 %v713
        %v887 = vpop.f32.mrb[0].mxu0
        %v888 = vadd.f32 %v695, %v887
        %v889 = vpop.f32.mrb[0].mxu0
        %v890 = vadd.f32 %v695, %v889
        %891 = vmatprep.mubr.f32.mxu0 0.0
        %892 = vmatmul.mubr.f32.gmra.mrb[0].mxu0 %v716
        %v893 = vpop.f32.mrb[0].mxu0
        %v894 = vadd.f32 %v700, %v893
        %v895 = vpop.f32.mrb[0].mxu0
        %v896 = vadd.f32 %v700, %v895
        %897 = vmatprep.mubr.f32.mxu0 0.0
        %898 = vmatmul.mubr.f32.gmra.mrb[0].mxu0 %v719
        %v899 = vpop.f32.mrb[0].mxu0
        %v900 = vadd.f32 %v705, %v899
        %v901 = vpop.f32.mrb[0].mxu0
        %v902 = vadd.f32 %v705, %v901
        %903 = vmatprep.mubr.f32.mxu0 0.0
        %904 = vmatmul.mubr.f32.gmra.mrb[0].mxu0 %v722
        %v905 = vpop.f32.mrb[0].mxu0
        %v906 = vadd.f32 %v710, %v905
        %v907 = vpop.f32.mrb[0].mxu0
        %v908 = vadd.f32 %v710, %v907
        %909 = vdwg.mxu0
        %v910 = vmax.f32 %v888, 0.0
        %v911 = vmax.f32 %v890, 0.0
        %v912 = vmax.f32 %v894, 0.0
        %v913 = vmax.f32 %v896, 0.0
        %v914 = vmax.f32 %v900, 0.0
        %v915 = vmax.f32 %v902, 0.0
        %v916 = vmax.f32 %v906, 0.0
        %v917 = vmax.f32 %v908, 0.0
        %v918 = vld [vmem:[%s5] sm:$0xff]
        %v919 = vld [vmem:[%s6] sm:$0xff]
        %921 = vset.pattern.permute.xlu0 0
        %922 = vperm.xlu0 %921, %v919
        %v923 = vpop.permute.xlu0 %922
        %v926 = vsel %vm475, %v918, 0
        %928 = vmatprep.subr.mxu0 %v911
        %929 = vmatpush1.msra.mxu0 %v910
        %930 = vmatprep.subr.mxu0 %v913
        %931 = vmatpush1.msra.mxu0 %v912
        %932 = vmatprep.subr.mxu0 %v915
        %933 = vmatpush1.msra.mxu0 %v914
        %934 = vmatprep.subr.mxu0 %v917
        %935 = vmatpush1.msra.mxu0 %v916
        %936 = vmatprep.subr.mxu0 0.0
        %937 = vmatpush1.msra.mxu0 0.0
        %938 = vmatprep.subr.mxu0 0.0
        %939 = vmatpush1.msra.mxu0 0.0
        %940 = vmatprep.subr.mxu0 0.0
        %941 = vmatpush1.msra.mxu0 0.0
        %942 = vmatprep.subr.mxu0 0.0
        %943 = vmatpush1.msra.mxu0 0.0
        %944 = vmatprep.subr.mxu0 0.0
        %945 = vmatpush1.msra.mxu0 0.0
        %946 = vmatprep.subr.mxu0 0.0
        %947 = vmatpush1.msra.mxu0 0.0
        %948 = vmatprep.subr.mxu0 0.0
        %949 = vmatpush1.msra.mxu0 0.0
        %950 = vmatprep.subr.mxu0 0.0
        %951 = vmatpush1.msra.mxu0 0.0
        %952 = vmatprep.subr.mxu0 0.0
        %953 = vmatpush1.msra.mxu0 0.0
        %954 = vmatprep.subr.mxu0 0.0
        %955 = vmatpush1.msra.mxu0 0.0
        %956 = vmatprep.subr.mxu0 0.0
        %957 = vmatpush1.msra.mxu0 0.0
        %958 = vmatprep.subr.mxu0 0.0
        %959 = vmatpush1.msra.mxu0 0.0
        %960 = vmatprep.subr.mxu0 0.0
        %961 = vmatpush1.msra.mxu0 0.0
        %962 = vmatprep.subr.mxu0 0.0
        %963 = vmatpush1.msra.mxu0 0.0
        %964 = vmatprep.subr.mxu0 0.0
        %965 = vmatpush1.msra.mxu0 0.0
        %966 = vmatprep.subr.mxu0 0.0
        %967 = vmatpush1.msra.mxu0 0.0
        %968 = vmatprep.subr.mxu0 0.0
        %969 = vmatpush1.msra.mxu0 0.0
        %970 = vmatprep.subr.mxu0 0.0
        %971 = vmatpush1.msra.mxu0 0.0
        %972 = vmatprep.subr.mxu0 0.0
        %973 = vmatpush1.msra.mxu0 0.0
        %974 = vmatprep.subr.mxu0 0.0
        %975 = vmatpush1.msra.mxu0 0.0
        %976 = vmatprep.subr.mxu0 0.0
        %977 = vmatpush1.msra.mxu0 0.0
        %978 = vmatprep.subr.mxu0 0.0
        %979 = vmatpush1.msra.mxu0 0.0
        %980 = vmatprep.subr.mxu0 0.0
        %981 = vmatpush1.msra.mxu0 0.0
        %982 = vmatprep.subr.mxu0 0.0
        %983 = vmatpush1.msra.mxu0 0.0
        %984 = vmatprep.subr.mxu0 0.0
        %985 = vmatpush1.msra.mxu0 0.0
        %986 = vmatprep.subr.mxu0 0.0
        %987 = vmatpush1.msra.mxu0 0.0
        %988 = vmatprep.subr.mxu0 0.0
        %989 = vmatpush1.msra.mxu0 0.0
        %990 = vmatprep.subr.mxu0 0.0
        %991 = vmatpush1.msra.mxu0 0.0
        %992 = vmatprep.mubr.f32.mxu0 0.0
        %993 = vmatmul.mubr.f32.gmra.mrb[0].mxu0 %v926
        %v994 = vpop.f32.mrb[0].mxu0
        %v995 = vadd.f32 %v923, %v994
        %v996 = vpop.f32.mrb[0].mxu0
        %v997 = vadd.f32 %v923, %v996
        %998 = vdwg.mxu0
        %999 = vst [vmem:[%s302] sm:$0xff] %v995
        %1000 = vst [vmem:[%s302 + $0x8] sm:$0xff] %v997
        %s1001 = sand.u32 %s181, 1
        %s1002 = scalar_lea.sflag [#allocation4], %s1001
        %s1003 = sand.u32 %s181, 1
        %s1004 = smul.addr %s1003, 16
        %s1005 = scalar_lea.vmem [#allocation3], %s1004
        // Predicated region
        $region72: #{implicit_densenet_forward.1} parent=66 // pred_check
          %p1006 = pneg %p191
        $region73: #{implicit_densenet_forward.1} parent=66 // pred_check_branch
          %1008 = sbr.rel (%p1006) target = $region75
        $region74: #{implicit_densenet_forward.1} parent=66 // pred_region
          %s1009 = smul.u32 2, %s21
          %s1011 = ssub.s32 256, 256
          %1012 = vsyncadd %s1002, %s1011
          %s1013 = smul.addr %s1009, 128
          %s1014 = scalar_lea.hbm %s7, %s1013
          %s1016 = sshll.u32 %s1005, 4
          %s1017 = int_to_ptr.vmem [resolvable:$true] %s1016
          %1019 = dma.vmem_to_hbm [thread:$0]  %s1017, 256, %s1014, %s1002
        $region75: #{implicit_densenet_forward.1} parent=66 // pred_fallthru
          _
      $region67: #{implicit_densenet_forward.1} parent=5 // pred_fallthru
        _
      %p1020 = scmp.le.s32.totalorder 2, %s16
      // Predicated region
      $region76: #{implicit_densenet_forward.1} parent=5 // pred_check
        %p1021 = pneg %p1020
      $region77: #{implicit_densenet_forward.1} parent=5 // pred_check_branch
        %1023 = sbr.rel (%p1021) target = $region79
      $region78: #{implicit_densenet_forward.1} parent=5 // pred_region
        %s1024 = ssub.s32 %s16, 2
        // Predicated region
        $region80: #{implicit_densenet_forward.1} parent=78 // pred_check
          %p1025 = pneg %p197
        $region81: #{implicit_densenet_forward.1} parent=78 // pred_check_branch
          %1027 = sbr.rel (%p1025) target = $region83
        $region82: #{implicit_densenet_forward.1} parent=78 // pred_region
          %s1028 = sand.u32 %s182, 1
          %s1029 = scalar_lea.sflag [#allocation4], %s1028
          %s1030 = sand.u32 %s182, 1
          %s1031 = smul.addr %s1030, 16
          %s1032 = scalar_lea.vmem [#allocation3], %s1031
          %1033 = dma.done %s1029, 256
        $region83: #{implicit_densenet_forward.1} parent=78 // pred_fallthru
          _
      $region79: #{implicit_densenet_forward.1} parent=5 // pred_fallthru
        _
    $region6: #{implicit_densenet_forward.1} parent=1 // loop_footer
      %s20 = sadd.s32 1, %s16
    $region7: #{implicit_densenet_forward.1} parent=1 // loop_footer_branch
      %15 = sbr.rel target = $region3
    $region8: #{implicit_densenet_forward.1} parent=1 // loop_exit
      _
    %1034 = vsyncpa [#allocation4], 1
    %s1035 = scalar_lea.sflag [#allocation4], 1
    %1036 = vsyncpa %s1035, 1

</llo_original>
